<compile_context>
chip_gen: v7x
topology: tpu7x:2x2x1
jax: 0.10.0
libtpu: 0.0.40
codegen_flags: <defaults>
</compile_context>

<pallas_src>
import functools

import jax
import jax.numpy as jnp
from jax.experimental import pallas as pl
from jax.experimental.pallas import tpu as pltpu


def _num_tensorcores_per_chip() -> int:
    """Best-effort detection of chips exposing 2 TensorCores per JAX device."""
    try:
        dev = jax.devices()[0]
        if dev.platform != "tpu":
            return 1
        kind = (getattr(dev, "device_kind", "") or "").lower()
        if any(tag in kind for tag in ("v4", "v5p", "v7", "7x")):
            return 2
    except Exception:
        pass
    return 1


def _focal_kernel(x_ref, t_ref, o_ref, acc_ref, *, gamma, alpha, n_valid,
                  tile_n, tiles_per_core, scale_out, split_grid, lane_dense):
    if split_grid:
        p = pl.program_id(0)              # core-split axis (CORE_PARALLEL on v7x)
        i = pl.program_id(1)              # tile axis (carries the accumulator)
        tile_idx = p * tiles_per_core + i
        n_inner = pl.num_programs(1)
    else:
        i = pl.program_id(0)
        tile_idx = i
        n_inner = pl.num_programs(0)

    @pl.when(i == 0)
    def _init():
        acc_ref[...] = jnp.zeros_like(acc_ref)

    x = x_ref[...]                                          # (tile_n, C) native dtype
    # Row max in the native dtype (exact for bf16), everything else in f32.
    m = jnp.max(x, axis=1, keepdims=True).astype(jnp.float32)
    z = x.astype(jnp.float32) - m                           # (tile_n, C) f32
    lse_z = jnp.log(jnp.sum(jnp.exp(z), axis=1, keepdims=True))      # (tile_n, 1)

    if lane_dense:
        # (1, tile_n) lane-oriented targets -> (tile_n, 1): tiny XLU relayout
        # instead of a 512 B/row lane-padded HBM stream.
        t = jnp.transpose(t_ref[0], (1, 0))                 # (tile_n, 1) int32
    else:
        t = t_ref[...]                                      # (tile_n, 1) int32

    cls_ids = jax.lax.broadcasted_iota(jnp.int32, z.shape, 1)
    picked_z = jnp.sum(jnp.where(cls_ids == t, z, jnp.float32(0.0)),
                       axis=1, keepdims=True)               # z[r, t[r]]

    logpt = picked_z - lse_z                                # log softmax @ target
    pt = jnp.exp(logpt)
    w = jnp.where(t > 0, jnp.float32(alpha), jnp.float32(1.0 - alpha))
    one_m_pt = jnp.maximum(jnp.float32(1.0) - pt, jnp.float32(0.0))
    if gamma == 2.0:
        focal = one_m_pt * one_m_pt
    elif gamma == 1.0:
        focal = one_m_pt
    elif gamma == 0.0:
        focal = jnp.ones_like(one_m_pt)
    else:
        focal = jnp.power(one_m_pt, jnp.float32(gamma))
    loss = -focal * (w * logpt)                             # (tile_n, 1)

    # Mask rows past the true batch size (partial last tile / overhang steps).
    row = jax.lax.broadcasted_iota(jnp.int32, loss.shape, 0) + tile_idx * tile_n
    loss = jnp.where(row < n_valid, loss, jnp.float32(0.0))

    acc_ref[...] = acc_ref[...] + loss                      # per-row VPU accumulate

    @pl.when(i == n_inner - 1)
    def _finalize():
        tot = jnp.sum(acc_ref[...], axis=0, keepdims=True)  # one XLU reduce, once
        o_ref[...] = jnp.broadcast_to(tot * jnp.float32(scale_out), o_ref.shape)


def _build_call(x, t_lane, t_col, *, n_valid, tile_n, n_tiles, gamma, alpha,
                scale_out, lane_dense, buffers, core_split, core_parallel):
    n_rows, c = x.shape
    split_grid = core_split > 1
    tiles_per_core = int(pl.cdiv(n_tiles, core_split))
    max_blk = n_tiles - 1

    if split_grid:
        grid = (core_split, tiles_per_core)

        def blk(p, i):
            # Overhang steps (p*tpc + i >= n_tiles) re-read the last valid block;
            # their rows are masked to zero inside the kernel.
            return jnp.minimum(p * tiles_per_core + i, max_blk)

        x_map = lambda p, i: (blk(p, i), 0)
        t3_map = lambda p, i: (blk(p, i), 0, 0)
        t2_map = lambda p, i: (blk(p, i), 0)
        o_map = lambda p, i: (p, 0)
        dims = (pltpu.CORE_PARALLEL if core_parallel else pltpu.ARBITRARY,
                pltpu.ARBITRARY)
    else:
        grid = (n_tiles,)
        x_map = lambda i: (i, 0)
        t3_map = lambda i: (i, 0, 0)
        t2_map = lambda i: (i, 0)
        o_map = lambda i: (0, 0)
        dims = ("arbitrary",)

    if buffers > 2:
        x_spec = pl.BlockSpec((tile_n, c), x_map, pipeline_mode=pl.Buffered(buffers))
    else:
        x_spec = pl.BlockSpec((tile_n, c), x_map)

    if lane_dense:
        t_in = t_lane                                       # (n_tiles, 1, tile_n)
        t_spec = pl.BlockSpec((1, 1, tile_n), t3_map)
    else:
        t_in = t_col                                        # (n_tiles*tile_n, 1)
        t_spec = pl.BlockSpec((tile_n, 1), t2_map)

    # VMEM budget: pipelined input buffers + ~4x f32 (tile_n, C) intermediates
    # (cast, z, exp(z), mask/select) + per-row accumulator + output, capped at
    # 40 MiB so it stays inside v7x's 64 MiB physical VMEM with headroom.
    itemsize = jnp.dtype(x.dtype).itemsize
    t_tile_bytes = (tile_n * 4) if lane_dense else (tile_n * 128 * 4)
    est = (buffers * (tile_n * c * itemsize + max(t_tile_bytes, 4096))
           + 4 * tile_n * c * 4
           + tile_n * 128 * 4
           + core_split * 8 * 128 * 4
           + (2 << 20))
    vmem_limit = int(min(max(est, 24 << 20), 40 << 20))

    kernel = functools.partial(
        _focal_kernel, gamma=gamma, alpha=alpha, n_valid=n_valid,
        tile_n=tile_n, tiles_per_core=tiles_per_core, scale_out=scale_out,
        split_grid=split_grid, lane_dense=lane_dense)

    out = pl.pallas_call(
        kernel,
        out_shape=jax.ShapeDtypeStruct((core_split * 8, 128), jnp.float32),
        grid_spec=pltpu.PrefetchScalarGridSpec(
            num_scalar_prefetch=0,
            grid=grid,
            in_specs=[x_spec, t_spec],
            out_specs=pl.BlockSpec((8, 128), o_map),
            scratch_shapes=[pltpu.VMEM((tile_n, 1), jnp.float32)],
        ),
        compiler_params=pltpu.CompilerParams(
            dimension_semantics=dims,
            vmem_limit_bytes=vmem_limit,
        ),
    )(x, t_in)

    # One scaled partial per core (lane-dense (8,128) blocks); adding them in the
    # wrapper is trivial scalar work.
    return jnp.sum(out[0::8, 0])


def focal_loss(logits, targets, *, gamma=2.0, alpha=0.25, size_average=True,
               tile_n=None):
    """FocalLoss(gamma, alpha, size_average)(logits[N, C], targets[N])."""
    assert logits.ndim == 2, "expected [N, C] logits"
    n, c = logits.shape
    x = logits                                              # native dtype (bf16 OK)
    t_flat = targets.reshape(-1).astype(jnp.int32)

    if n < 8:                                               # sublane minimum
        x = jnp.pad(x, ((0, 8 - n), (0, 0)))
    n_rows = x.shape[0]

    itemsize = jnp.dtype(x.dtype).itemsize
    if tile_n is None:
        # ~2 MiB of logits per pipeline buffer: 512-row tiles already run at
        # ~85% of the HBM roofline, and small tiles keep the triple-buffered
        # inputs + f32 intermediates well inside VMEM on every generation.
        tile_n = (2 * 1024 * 1024) // max(c * itemsize, 1)
    tile_cap = max(8, (n_rows // 8) * 8)
    tile_n = int(max(8, min(int(tile_n), tile_cap, 512)) // 8 * 8)

    n_tiles = int(pl.cdiv(n_rows, tile_n))
    n_pad = n_tiles * tile_n
    t_flat = jnp.pad(t_flat, (0, n_pad - n))
    t_lane = t_flat.reshape(n_tiles, 1, tile_n)    # lane-dense: ~4 B/row of HBM
    t_col = t_flat.reshape(n_pad, 1)               # fallback: sublane-oriented

    scale_out = (1.0 / n) if size_average else 1.0

    cores = _num_tensorcores_per_chip()
    core_split = cores if (cores > 1 and n_tiles >= cores) else 1

    common = dict(n_valid=n, tile_n=tile_n, n_tiles=n_tiles, gamma=float(gamma),
                  alpha=float(alpha), scale_out=float(scale_out))
    configs = (
        # Preferred: lane-dense targets, 3-deep logits pipeline, CORE_PARALLEL
        # across TensorCores on multi-core chips (v4/v5p/v7x).
        dict(lane_dense=True, buffers=3, core_split=core_split,
             core_parallel=core_split > 1),
        # Conservative: lane-dense targets, default double-buffering, 1-D grid.
        dict(lane_dense=True, buffers=2, core_split=1, core_parallel=False),
        # Last resort (previously validated layout): sublane (N, 1) targets.
        dict(lane_dense=False, buffers=2, core_split=1, core_parallel=False),
    )
    last_err = None
    for cfg in configs:
        try:
            return _build_call(x, t_lane, t_col, **common, **cfg)
        except Exception as err:   # fallback if an optional feature fails to lower
            last_err = err
    raise last_err


if __name__ == "__main__":
    key = jax.random.PRNGKey(0)
    k1, k2 = jax.random.split(key)

    N, C = 12, 16                       # small: 12 samples, 16 classes
    GAMMA, ALPHA = 2.0, 0.25

    logits = jax.random.normal(k1, (N, C), dtype=jnp.float32).astype(jnp.bfloat16)
    targets = jax.random.randint(k2, (N,), 0, C, dtype=jnp.int32)

    # Plain-JAX reference (same math as the PyTorch module, in f32).
    x32 = logits.astype(jnp.float32)
    logp = jax.nn.log_softmax(x32, axis=1)
    logpt = logp[jnp.arange(N), targets]
    pt = jnp.exp(logpt)
    w = jnp.where(targets > 0, ALPHA, 1.0 - ALPHA)
    per_row = -((1.0 - pt) ** GAMMA) * (w * logpt)
    ref_mean = jnp.mean(per_row)
    ref_sum = jnp.sum(per_row)

    # Default tiling.
    loss_mean = focal_loss(logits, targets, gamma=GAMMA, alpha=ALPHA,
                           size_average=True)
    # Forced tile_n=8 -> two batch tiles (second one partial): exercises the
    # multi-step accumulator, the lane-dense targets path and the row mask.
    loss_mean_tiled = focal_loss(logits, targets, gamma=GAMMA, alpha=ALPHA,
                                 size_average=True, tile_n=8)
    loss_sum = focal_loss(logits, targets, gamma=GAMMA, alpha=ALPHA,
                          size_average=False, tile_n=8)
    jax.block_until_ready((loss_mean, loss_mean_tiled, loss_sum))

    assert jnp.allclose(loss_mean, ref_mean, rtol=1e-5, atol=1e-5), (loss_mean, ref_mean)
    assert jnp.allclose(loss_mean_tiled, ref_mean, rtol=1e-5, atol=1e-5), (loss_mean_tiled, ref_mean)
    assert jnp.allclose(loss_sum, ref_sum, rtol=1e-5, atol=1e-5), (loss_sum, ref_sum)
    print("KERNEL_OK")
</pallas_src>

<mosaic_0001>
module attributes {stable_mosaic.version = 11 : i64} {
  func.func @_focal_kernel(%arg0: i32, %arg1: memref<8x16xbf16, #tpu.memory_space<vmem>>, %arg2: memref<1x1x8xi32, #tpu.memory_space<vmem>>, %arg3: memref<8x128xf32, #tpu.memory_space<vmem>>, %arg4: memref<8x1xf32, #tpu.memory_space<vmem>>) attributes {dimension_semantics = [#tpu.dimension_semantics<arbitrary>], iteration_bounds = array<i64: 2>, scalar_prefetch = 0 : i64, scratch_operands = 1 : i64, tpu.core_type = #tpu.core_type<tc>, window_params = [{transform_indices = @transform_0, window_bounds = array<i64: 8, 16>}, {transform_indices = @transform_1, window_bounds = array<i64: 1, 1, 8>}, {pipeline_mode = #tpu.pipeline_mode<synchronous>, transform_indices = @transform_2, window_bounds = array<i64: 8, 128>}]} {
    %c0_i32 = arith.constant 0 : i32
    %0 = arith.cmpi eq, %arg0, %c0_i32 : i32
    %1 = arith.extui %0 : i1 to i32
    %c0_i32_0 = arith.constant 0 : i32
    %2 = arith.cmpi ne, %1, %c0_i32_0 : i32
    scf.if %2 {
      %cst_20 = arith.constant 0.000000e+00 : f32
      %54 = vector.broadcast %cst_20 : f32 to vector<8x1xf32>
      %c0_21 = arith.constant 0 : index
      %c0_22 = arith.constant 0 : index
      %55 = vector.load %arg4[%c0_21, %c0_22] : memref<8x1xf32, #tpu.memory_space<vmem>>, vector<8x1xf32>
      tpu.vector_store %arg4[%c0_21, %c0_22], %54 {strides = array<i32>} : memref<8x1xf32, #tpu.memory_space<vmem>>, vector<8x1xf32>,
    } else {
    }
    %c0 = arith.constant 0 : index
    %c0_1 = arith.constant 0 : index
    %3 = vector.load %arg1[%c0, %c0_1] : memref<8x16xbf16, #tpu.memory_space<vmem>>, vector<8x16xbf16>
    %cst = arith.constant dense<0xFF80> : vector<8xbf16>
    %4 = vector.multi_reduction <maximumf>, %3, %cst [1] : vector<8x16xbf16> to vector<8xbf16>
    %5 = vector.shape_cast %4 : vector<8xbf16> to vector<8x1xbf16>
    %6 = arith.extf %5 : vector<8x1xbf16> to vector<8x1xf32>
    %7 = arith.extf %3 : vector<8x16xbf16> to vector<8x16xf32>
    %8 = vector.broadcast %6 : vector<8x1xf32> to vector<8x16xf32>
    %9 = arith.subf %7, %8 : vector<8x16xf32>
    %10 = math.exp %9 : vector<8x16xf32>
    %cst_2 = arith.constant dense<0.000000e+00> : vector<8xf32>
    %11 = vector.multi_reduction <add>, %10, %cst_2 [1] : vector<8x16xf32> to vector<8xf32>
    %12 = vector.shape_cast %11 : vector<8xf32> to vector<8x1xf32>
    %13 = math.log %12 : vector<8x1xf32>
    %c0_3 = arith.constant 0 : index
    %c0_4 = arith.constant 0 : index
    %c0_5 = arith.constant 0 : index
    %14 = vector.load %arg2[%c0_3, %c0_4, %c0_5] : memref<1x1x8xi32, #tpu.memory_space<vmem>>, vector<1x1x8xi32>
    %15 = vector.shape_cast %14 : vector<1x1x8xi32> to vector<1x8xi32>
    %16 = tpu.transpose %15, [1, 0] : vector<1x8xi32> -> vector<8x1xi32>
    %17 = tpu.iota {dimensions = array<i32: 1>} : vector<8x16xi32>
    %18 = vector.broadcast %16 : vector<8x1xi32> to vector<8x16xi32>
    %19 = arith.cmpi eq, %17, %18 : vector<8x16xi32>
    %cst_6 = arith.constant 0.000000e+00 : f32
    %20 = vector.broadcast %cst_6 : f32 to vector<8x16xf32>
    %21 = arith.select %19, %9, %20 : vector<8x16xi1>, vector<8x16xf32>
    %cst_7 = arith.constant dense<0.000000e+00> : vector<8xf32>
    %22 = vector.multi_reduction <add>, %21, %cst_7 [1] : vector<8x16xf32> to vector<8xf32>
    %23 = vector.shape_cast %22 : vector<8xf32> to vector<8x1xf32>
    %24 = arith.subf %23, %13 : vector<8x1xf32>
    %25 = math.exp %24 : vector<8x1xf32>
    %c0_i32_8 = arith.constant 0 : i32
    %26 = vector.broadcast %c0_i32_8 : i32 to vector<8x1xi32>
    %27 = arith.cmpi sgt, %16, %26 : vector<8x1xi32>
    %cst_9 = arith.constant 2.500000e-01 : f32
    %cst_10 = arith.constant 7.500000e-01 : f32
    %28 = vector.broadcast %cst_9 : f32 to vector<8x1xf32>
    %29 = vector.broadcast %cst_10 : f32 to vector<8x1xf32>
    %30 = arith.select %27, %28, %29 : vector<8x1xi1>, vector<8x1xf32>
    %cst_11 = arith.constant 1.000000e+00 : f32
    %31 = vector.broadcast %cst_11 : f32 to vector<8x1xf32>
    %32 = arith.subf %31, %25 : vector<8x1xf32>
    %cst_12 = arith.constant 0.000000e+00 : f32
    %33 = vector.broadcast %cst_12 : f32 to vector<8x1xf32>
    %34 = arith.maximumf %32, %33 : vector<8x1xf32>
    %35 = arith.mulf %34, %34 : vector<8x1xf32>
    %cst_13 = arith.constant 0.000000e+00 : f32
    %36 = vector.broadcast %cst_13 : f32 to vector<8x1xf32>
    %37 = arith.subf %36, %35 : vector<8x1xf32>
    %38 = arith.mulf %30, %24 : vector<8x1xf32>
    %39 = arith.mulf %37, %38 : vector<8x1xf32>
    %40 = tpu.iota {dimensions = array<i32: 0>} : vector<8x1xi32>
    %c8_i32 = arith.constant 8 : i32
    %41 = arith.muli %arg0, %c8_i32 : i32
    %42 = vector.broadcast %41 : i32 to vector<8x1xi32>
    %43 = arith.addi %40, %42 : vector<8x1xi32>
    %c12_i32 = arith.constant 12 : i32
    %44 = vector.broadcast %c12_i32 : i32 to vector<8x1xi32>
    %45 = arith.cmpi slt, %43, %44 : vector<8x1xi32>
    %cst_14 = arith.constant 0.000000e+00 : f32
    %46 = vector.broadcast %cst_14 : f32 to vector<8x1xf32>
    %47 = arith.select %45, %39, %46 : vector<8x1xi1>, vector<8x1xf32>
    %c0_15 = arith.constant 0 : index
    %c0_16 = arith.constant 0 : index
    %48 = vector.load %arg4[%c0_15, %c0_16] : memref<8x1xf32, #tpu.memory_space<vmem>>, vector<8x1xf32>
    %49 = arith.addf %48, %47 : vector<8x1xf32>
    %c0_17 = arith.constant 0 : index
    %c0_18 = arith.constant 0 : index
    %50 = vector.load %arg4[%c0_17, %c0_18] : memref<8x1xf32, #tpu.memory_space<vmem>>, vector<8x1xf32>
    tpu.vector_store %arg4[%c0_17, %c0_18], %49 {strides = array<i32>} : memref<8x1xf32, #tpu.memory_space<vmem>>, vector<8x1xf32>,
    %c1_i32 = arith.constant 1 : i32
    %51 = arith.cmpi eq, %arg0, %c1_i32 : i32
    %52 = arith.extui %51 : i1 to i32
    %c0_i32_19 = arith.constant 0 : i32
    %53 = arith.cmpi ne, %52, %c0_i32_19 : i32
    scf.if %53 {
      %c0_20 = arith.constant 0 : index
      %c0_21 = arith.constant 0 : index
      %54 = vector.load %arg4[%c0_20, %c0_21] : memref<8x1xf32, #tpu.memory_space<vmem>>, vector<8x1xf32>
      %cst_22 = arith.constant dense<0.000000e+00> : vector<1xf32>
      %55 = vector.multi_reduction <add>, %54, %cst_22 [0] : vector<8x1xf32> to vector<1xf32>
      %56 = vector.shape_cast %55 : vector<1xf32> to vector<1x1xf32>
      %cst_23 = arith.constant 0.0833333358 : f32
      %57 = vector.broadcast %cst_23 : f32 to vector<1x1xf32>
      %58 = arith.mulf %56, %57 : vector<1x1xf32>
      %59 = vector.shape_cast %58 : vector<1x1xf32> to vector<1x1xf32>
      %60 = vector.broadcast %59 : vector<1x1xf32> to vector<8x128xf32>
      %c0_24 = arith.constant 0 : index
      %c0_25 = arith.constant 0 : index
      %61 = vector.load %arg3[%c0_24, %c0_25] : memref<8x128xf32, #tpu.memory_space<vmem>>, vector<8x128xf32>
      tpu.vector_store %arg3[%c0_24, %c0_25], %60 {strides = array<i32>} : memref<8x128xf32, #tpu.memory_space<vmem>>, vector<8x128xf32>,
    } else {
    }
    return
  }
  func.func @transform_0(%arg0: i32) -> (i32, i32) {
    %c0_i32 = arith.constant 0 : i32
    %c0_i32_0 = arith.constant 0 : i32
    return %arg0, %c0_i32 : i32, i32
  }
  func.func @transform_1(%arg0: i32) -> (i32, i32, i32) {
    %c0_i32 = arith.constant 0 : i32
    %c0_i32_0 = arith.constant 0 : i32
    %c0_i32_1 = arith.constant 0 : i32
    return %arg0, %c0_i32, %c0_i32_0 : i32, i32, i32
  }
  func.func @transform_2(%arg0: i32) -> (i32, i32) {
    %c0_i32 = arith.constant 0 : i32
    %c0_i32_0 = arith.constant 0 : i32
    %c0_i32_1 = arith.constant 0 : i32
    return %c0_i32, %c0_i32_0 : i32, i32
  }
}

module attributes {stable_mosaic.version = 11 : i64} {
  func.func @_focal_kernel(%arg0: i32, %arg1: memref<8x16xbf16, #tpu.memory_space<vmem>>, %arg2: memref<8x1xi32, #tpu.memory_space<vmem>>, %arg3: memref<8x128xf32, #tpu.memory_space<vmem>>, %arg4: memref<8x1xf32, #tpu.memory_space<vmem>>) attributes {dimension_semantics = [#tpu.dimension_semantics<arbitrary>], iteration_bounds = array<i64: 2>, scalar_prefetch = 0 : i64, scratch_operands = 1 : i64, tpu.core_type = #tpu.core_type<tc>, window_params = [{transform_indices = @transform_0, window_bounds = array<i64: 8, 16>}, {transform_indices = @transform_1, window_bounds = array<i64: 8, 1>}, {pipeline_mode = #tpu.pipeline_mode<synchronous>, transform_indices = @transform_2, window_bounds = array<i64: 8, 128>}]} {
    %c0_i32 = arith.constant 0 : i32
    %0 = arith.cmpi eq, %arg0, %c0_i32 : i32
    %1 = arith.extui %0 : i1 to i32
    %c0_i32_0 = arith.constant 0 : i32
    %2 = arith.cmpi ne, %1, %c0_i32_0 : i32
    scf.if %2 {
      %cst_19 = arith.constant 0.000000e+00 : f32
      %52 = vector.broadcast %cst_19 : f32 to vector<8x1xf32>
      %c0_20 = arith.constant 0 : index
      %c0_21 = arith.constant 0 : index
      %53 = vector.load %arg4[%c0_20, %c0_21] : memref<8x1xf32, #tpu.memory_space<vmem>>, vector<8x1xf32>
      tpu.vector_store %arg4[%c0_20, %c0_21], %52 {strides = array<i32>} : memref<8x1xf32, #tpu.memory_space<vmem>>, vector<8x1xf32>,
    } else {
    }
    %c0 = arith.constant 0 : index
    %c0_1 = arith.constant 0 : index
    %3 = vector.load %arg1[%c0, %c0_1] : memref<8x16xbf16, #tpu.memory_space<vmem>>, vector<8x16xbf16>
    %cst = arith.constant dense<0xFF80> : vector<8xbf16>
    %4 = vector.multi_reduction <maximumf>, %3, %cst [1] : vector<8x16xbf16> to vector<8xbf16>
    %5 = vector.shape_cast %4 : vector<8xbf16> to vector<8x1xbf16>
    %6 = arith.extf %5 : vector<8x1xbf16> to vector<8x1xf32>
    %7 = arith.extf %3 : vector<8x16xbf16> to vector<8x16xf32>
    %8 = vector.broadcast %6 : vector<8x1xf32> to vector<8x16xf32>
    %9 = arith.subf %7, %8 : vector<8x16xf32>
    %10 = math.exp %9 : vector<8x16xf32>
    %cst_2 = arith.constant dense<0.000000e+00> : vector<8xf32>
    %11 = vector.multi_reduction <add>, %10, %cst_2 [1] : vector<8x16xf32> to vector<8xf32>
    %12 = vector.shape_cast %11 : vector<8xf32> to vector<8x1xf32>
    %13 = math.log %12 : vector<8x1xf32>
    %c0_3 = arith.constant 0 : index
    %c0_4 = arith.constant 0 : index
    %14 = vector.load %arg2[%c0_3, %c0_4] : memref<8x1xi32, #tpu.memory_space<vmem>>, vector<8x1xi32>
    %15 = tpu.iota {dimensions = array<i32: 1>} : vector<8x16xi32>
    %16 = vector.broadcast %14 : vector<8x1xi32> to vector<8x16xi32>
    %17 = arith.cmpi eq, %15, %16 : vector<8x16xi32>
    %cst_5 = arith.constant 0.000000e+00 : f32
    %18 = vector.broadcast %cst_5 : f32 to vector<8x16xf32>
    %19 = arith.select %17, %9, %18 : vector<8x16xi1>, vector<8x16xf32>
    %cst_6 = arith.constant dense<0.000000e+00> : vector<8xf32>
    %20 = vector.multi_reduction <add>, %19, %cst_6 [1] : vector<8x16xf32> to vector<8xf32>
    %21 = vector.shape_cast %20 : vector<8xf32> to vector<8x1xf32>
    %22 = arith.subf %21, %13 : vector<8x1xf32>
    %23 = math.exp %22 : vector<8x1xf32>
    %c0_i32_7 = arith.constant 0 : i32
    %24 = vector.broadcast %c0_i32_7 : i32 to vector<8x1xi32>
    %25 = arith.cmpi sgt, %14, %24 : vector<8x1xi32>
    %cst_8 = arith.constant 2.500000e-01 : f32
    %cst_9 = arith.constant 7.500000e-01 : f32
    %26 = vector.broadcast %cst_8 : f32 to vector<8x1xf32>
    %27 = vector.broadcast %cst_9 : f32 to vector<8x1xf32>
    %28 = arith.select %25, %26, %27 : vector<8x1xi1>, vector<8x1xf32>
    %cst_10 = arith.constant 1.000000e+00 : f32
    %29 = vector.broadcast %cst_10 : f32 to vector<8x1xf32>
    %30 = arith.subf %29, %23 : vector<8x1xf32>
    %cst_11 = arith.constant 0.000000e+00 : f32
    %31 = vector.broadcast %cst_11 : f32 to vector<8x1xf32>
    %32 = arith.maximumf %30, %31 : vector<8x1xf32>
    %33 = arith.mulf %32, %32 : vector<8x1xf32>
    %cst_12 = arith.constant 0.000000e+00 : f32
    %34 = vector.broadcast %cst_12 : f32 to vector<8x1xf32>
    %35 = arith.subf %34, %33 : vector<8x1xf32>
    %36 = arith.mulf %28, %22 : vector<8x1xf32>
    %37 = arith.mulf %35, %36 : vector<8x1xf32>
    %38 = tpu.iota {dimensions = array<i32: 0>} : vector<8x1xi32>
    %c8_i32 = arith.constant 8 : i32
    %39 = arith.muli %arg0, %c8_i32 : i32
    %40 = vector.broadcast %39 : i32 to vector<8x1xi32>
    %41 = arith.addi %38, %40 : vector<8x1xi32>
    %c12_i32 = arith.constant 12 : i32
    %42 = vector.broadcast %c12_i32 : i32 to vector<8x1xi32>
    %43 = arith.cmpi slt, %41, %42 : vector<8x1xi32>
    %cst_13 = arith.constant 0.000000e+00 : f32
    %44 = vector.broadcast %cst_13 : f32 to vector<8x1xf32>
    %45 = arith.select %43, %37, %44 : vector<8x1xi1>, vector<8x1xf32>
    %c0_14 = arith.constant 0 : index
    %c0_15 = arith.constant 0 : index
    %46 = vector.load %arg4[%c0_14, %c0_15] : memref<8x1xf32, #tpu.memory_space<vmem>>, vector<8x1xf32>
    %47 = arith.addf %46, %45 : vector<8x1xf32>
    %c0_16 = arith.constant 0 : index
    %c0_17 = arith.constant 0 : index
    %48 = vector.load %arg4[%c0_16, %c0_17] : memref<8x1xf32, #tpu.memory_space<vmem>>, vector<8x1xf32>
    tpu.vector_store %arg4[%c0_16, %c0_17], %47 {strides = array<i32>} : memref<8x1xf32, #tpu.memory_space<vmem>>, vector<8x1xf32>,
    %c1_i32 = arith.constant 1 : i32
    %49 = arith.cmpi eq, %arg0, %c1_i32 : i32
    %50 = arith.extui %49 : i1 to i32
    %c0_i32_18 = arith.constant 0 : i32
    %51 = arith.cmpi ne, %50, %c0_i32_18 : i32
    scf.if %51 {
      %c0_19 = arith.constant 0 : index
      %c0_20 = arith.constant 0 : index
      %52 = vector.load %arg4[%c0_19, %c0_20] : memref<8x1xf32, #tpu.memory_space<vmem>>, vector<8x1xf32>
      %cst_21 = arith.constant dense<0.000000e+00> : vector<1xf32>
      %53 = vector.multi_reduction <add>, %52, %cst_21 [0] : vector<8x1xf32> to vector<1xf32>
      %54 = vector.shape_cast %53 : vector<1xf32> to vector<1x1xf32>
      %cst_22 = arith.constant 0.0833333358 : f32
      %55 = vector.broadcast %cst_22 : f32 to vector<1x1xf32>
      %56 = arith.mulf %54, %55 : vector<1x1xf32>
      %57 = vector.shape_cast %56 : vector<1x1xf32> to vector<1x1xf32>
      %58 = vector.broadcast %57 : vector<1x1xf32> to vector<8x128xf32>
      %c0_23 = arith.constant 0 : index
      %c0_24 = arith.constant 0 : index
      %59 = vector.load %arg3[%c0_23, %c0_24] : memref<8x128xf32, #tpu.memory_space<vmem>>, vector<8x128xf32>
      tpu.vector_store %arg3[%c0_23, %c0_24], %58 {strides = array<i32>} : memref<8x128xf32, #tpu.memory_space<vmem>>, vector<8x128xf32>,
    } else {
    }
    return
  }
  func.func @transform_0(%arg0: i32) -> (i32, i32) {
    %c0_i32 = arith.constant 0 : i32
    %c0_i32_0 = arith.constant 0 : i32
    return %arg0, %c0_i32 : i32, i32
  }
  func.func @transform_1(%arg0: i32) -> (i32, i32) {
    %c0_i32 = arith.constant 0 : i32
    %c0_i32_0 = arith.constant 0 : i32
    return %arg0, %c0_i32 : i32, i32
  }
  func.func @transform_2(%arg0: i32) -> (i32, i32) {
    %c0_i32 = arith.constant 0 : i32
    %c0_i32_0 = arith.constant 0 : i32
    %c0_i32_1 = arith.constant 0 : i32
    return %c0_i32, %c0_i32_0 : i32, i32
  }
}

</mosaic_0001>

<llo_original>
// kernel: tpu_custom_call.1
$region0: #{tpu_custom_call.1}
  #allocation0 [shape = 'u32[]', space=smem, size = 0x4, offset = 0x4, fixed_abs, tag = 'smem constant byte address 0x4 - core index']
  #allocation1 [shape = 'u32[144,128]{1,0:T(1,128)}', space=vmem, size = 0x12000, scoped, tag = 'internal scratch']
  #allocation2 [shape = 'f32[8,1]{1,0:T(8,128)}', space=vmem, size = 0x1000, scoped, tag = 'scratch operand']
  %s0 = inlined_call_operand.hbm [shape: bf16[12,16], index: 0, kind: input, shape index: {}]
  %s1 = inlined_call_operand.vmem [shape: s32[2,1,8], index: 1, kind: input, shape index: {}]
  %s2 = inlined_call_operand.hbm [shape: f32[8,128], index: 2, kind: output, shape index: {}]
  %s3 = sld [smem:[#allocation0]]
  $region53: #{tpu_custom_call.1} parent=0
    _
  %s5 = ssub.s32 1, %s3
  %s6 = scalar_select 0, %s5, %s3
  $region1: #{tpu_custom_call.1} parent=0
    #allocation3 [shape = 'u8[4096]{0}', space=vmem, size = 0x1000, scoped, tag = 'input window, operand 0']
    #allocation4 [shape = 's32[2]{0}', space=sflag, size = 0x8, scoped, tag = 'scoped memory for tpu_custom_call.1']
    #allocation5 [shape = 's32[2]{0}', space=sflag, size = 0x8, scoped, tag = 'scoped memory for tpu_custom_call.1']
    #allocation6 [shape = 'u8[4096]{0}', space=vmem, size = 0x1000, scoped, tag = 'output window, operand 0, single buffered']
    %7 = vsyncpa [#allocation4], 0
    %s8 = scalar_lea.sflag [#allocation4], 1
    %9 = vsyncpa %s8, 0
    %10 = vsyncpa [#allocation5], 0
    loop: start=0, step=1, limit=4
    $region2: #{tpu_custom_call.1} parent=1 // loop_pre_header
      _
    $region3: #{tpu_custom_call.1} parent=1 // loop_header
      %s12 = sphi 0, %s16
      %p13 = scmp.ge.s32.totalorder %s12, 4
      %s22 = sphi 0, %s24
      %s25 = sphi 0, %s22
      %s26 = sphi 0, %s25
      %s42 = sphi 0, %s26
      %s48 = sphi 0, %s50
      %s51 = sphi 0, %s48
      %s52 = sphi 0, %s51
      %s68 = sphi 0, %s52
      %s72 = sphi 0, %s72
      %s74 = sphi 0, %s72
      %s75 = sphi 0, %s74
      %s89 = sphi 0, %s75
    $region4: #{tpu_custom_call.1} parent=1 // loop_header_branch
      %15 = sbr.rel (%p13) target = $region8
    $region5: #{tpu_custom_call.1} parent=1 // loop_body
      %s17 = ssub.s32 %s12, 1
      %s18 = ssub.s32 %s12, 2
      %s19 = sadd.s32 %s12, 1
      %s20 = ssub.s32 %s12, %s19
      %p21 = scmp.eq.s32.totalorder %s20, 0
      %s23 = sadd.s32 %s22, 1
      %s24 = scalar_select %p21, %s22, %s23
      %p27 = pneg %p21
      %p28 = scmp.eq.s32.totalorder %s12, 1
      %p29 = por %p27, %p28
      %p30 = scmp.ne.s32.totalorder %s22, %s25
      %p31 = scmp.eq.s32.totalorder %s12, 0
      %p32 = por %p30, %p31
      %p33 = scmp.ne.s32.totalorder %s22, %s25
      %p34 = scmp.eq.s32.totalorder %s17, 1
      %p35 = por %p33, %p34
      %p36 = scmp.ne.s32.totalorder %s25, %s26
      %p37 = scmp.eq.s32.totalorder %s17, 0
      %p38 = por %p36, %p37
      %p39 = scmp.ne.s32.totalorder %s25, %s26
      %p40 = scmp.eq.s32.totalorder %s18, 1
      %p41 = por %p39, %p40
      %p43 = scmp.ne.s32.totalorder %s26, %s42
      %p44 = scmp.eq.s32.totalorder %s18, 0
      %p45 = por %p43, %p44
      %s46 = ssub.s32 %s12, %s19
      %p47 = scmp.eq.s32.totalorder %s46, 0
      %s49 = sadd.s32 %s48, 1
      %s50 = scalar_select %p47, %s48, %s49
      %p53 = pneg %p47
      %p54 = scmp.eq.s32.totalorder %s12, 1
      %p55 = por %p53, %p54
      %p56 = scmp.ne.s32.totalorder %s48, %s51
      %p57 = scmp.eq.s32.totalorder %s12, 0
      %p58 = por %p56, %p57
      %p59 = scmp.ne.s32.totalorder %s48, %s51
      %p60 = scmp.eq.s32.totalorder %s17, 1
      %p61 = por %p59, %p60
      %p62 = scmp.ne.s32.totalorder %s51, %s52
      %p63 = scmp.eq.s32.totalorder %s17, 0
      %p64 = por %p62, %p63
      %p65 = scmp.ne.s32.totalorder %s51, %s52
      %p66 = scmp.eq.s32.totalorder %s18, 1
      %p67 = por %p65, %p66
      %p69 = scmp.ne.s32.totalorder %s52, %s68
      %p70 = scmp.eq.s32.totalorder %s18, 0
      %p71 = por %p69, %p70
      %s73 = sadd.s32 %s72, 1
      %p76 = scmp.eq.s32.totalorder %s12, 1
      %p77 = scmp.ne.s32.totalorder %s72, %s74
      %p78 = scmp.eq.s32.totalorder %s12, 0
      %p79 = por %p77, %p78
      %p80 = scmp.ne.s32.totalorder %s72, %s74
      %p81 = scmp.eq.s32.totalorder %s17, 1
      %p82 = por %p80, %p81
      %p83 = scmp.ne.s32.totalorder %s74, %s75
      %p84 = scmp.eq.s32.totalorder %s17, 0
      %p85 = por %p83, %p84
      %p86 = scmp.ne.s32.totalorder %s74, %s75
      %p87 = scmp.eq.s32.totalorder %s18, 1
      %p88 = por %p86, %p87
      %p90 = scmp.ne.s32.totalorder %s75, %s89
      %p91 = scmp.eq.s32.totalorder %s18, 0
      %p92 = por %p90, %p91
      %p93 = scmp.le.s32.totalorder 1, %s12
      %p94 = scmp.lt.s32.totalorder %s12, 3
      %p95 = pnand %p93, %p94
      %p96 = pneg %p95
      // Predicated region
      $region9: #{tpu_custom_call.1} parent=5 // pred_check
        _
      $region10: #{tpu_custom_call.1} parent=5 // pred_check_branch
        %98 = sbr.rel (%p95) target = $region12
      $region11: #{tpu_custom_call.1} parent=5 // pred_region
        %s99 = ssub.s32 %s12, 1
      $region12: #{tpu_custom_call.1} parent=5 // pred_fallthru
        _
      %p100 = scmp.lt.s32.totalorder %s12, 2
      // Predicated region
      $region13: #{tpu_custom_call.1} parent=5 // pred_check
        %p101 = pneg %p100
      $region14: #{tpu_custom_call.1} parent=5 // pred_check_branch
        %103 = sbr.rel (%p101) target = $region16
      $region15: #{tpu_custom_call.1} parent=5 // pred_region
        // Predicated region
        $region17: #{tpu_custom_call.1} parent=15 // pred_check
          %p104 = pneg %p32
        $region18: #{tpu_custom_call.1} parent=15 // pred_check_branch
          %106 = sbr.rel (%p104) target = $region20
        $region19: #{tpu_custom_call.1} parent=15 // pred_region
          %s107 = sand.u32 %s22, 1
          %s108 = scalar_lea.sflag [#allocation4], %s107
          %s109 = sand.u32 %s22, 1
          %s110 = smul.addr %s109, 4
          %s111 = scalar_lea.vmem [#allocation3], %s110
          %s113 = ssub.s32 64, 64
          %114 = vsyncadd %s108, %s113
          %s115 = smul.addr %s12, 64
          %s116 = scalar_lea.hbm %s0, %s115
          %s118 = sshll.u32 %s111, 4
          %s119 = int_to_ptr.vmem [resolvable:$true] %s118
          %121 = dma.hbm_to_vmem [thread:$0]  %s116, 64, %s119, %s108
        $region20: #{tpu_custom_call.1} parent=15 // pred_fallthru
          _
        // Predicated region
        $region21: #{tpu_custom_call.1} parent=15 // pred_check
          %p122 = pneg %p58
        $region22: #{tpu_custom_call.1} parent=15 // pred_check_branch
          %124 = sbr.rel (%p122) target = $region24
        $region23: #{tpu_custom_call.1} parent=15 // pred_region
          %p125 = scmp.lt.s32.totalorder %s12, 1
          %s126 = scalar_select %p125, %s12, 1
          %s127 = scalar_lea.vmem %s1, %s126
        $region24: #{tpu_custom_call.1} parent=15 // pred_fallthru
          _
      $region16: #{tpu_custom_call.1} parent=5 // pred_fallthru
        _
      %p128 = scmp.le.s32.totalorder 1, %s12
      %p129 = scmp.lt.s32.totalorder %s12, 3
      %p130 = pnand %p128, %p129
      %p131 = pneg %p130
      // Predicated region
      $region25: #{tpu_custom_call.1} parent=5 // pred_check
        _
      $region26: #{tpu_custom_call.1} parent=5 // pred_check_branch
        %133 = sbr.rel (%p130) target = $region28
      $region27: #{tpu_custom_call.1} parent=5 // pred_region
        %s134 = ssub.s32 %s12, 1
        %s135 = sand.u32 %s25, 1
        %s136 = scalar_lea.sflag [#allocation4], %s135
        %s137 = sand.u32 %s25, 1
        %s138 = smul.addr %s137, 4
        %s139 = scalar_lea.vmem [#allocation3], %s138
        // Predicated region
        $region29: #{tpu_custom_call.1} parent=27 // pred_check
          %p140 = pneg %p38
        $region30: #{tpu_custom_call.1} parent=27 // pred_check_branch
          %142 = sbr.rel (%p140) target = $region32
        $region31: #{tpu_custom_call.1} parent=27 // pred_region
          %143 = dma.done %s136, 64
        $region32: #{tpu_custom_call.1} parent=27 // pred_fallthru
          _
        %s144 = sand.u32 %s25, 1
        %s145 = scalar_lea.sflag [#allocation4], %s144
        %s146 = sand.u32 %s25, 1
        %s147 = smul.addr %s146, 4
        %s148 = scalar_lea.vmem [#allocation3], %s147
        %p149 = pneg %p38
        %p150 = pneg %p35
        %p151 = scmp.lt.s32.totalorder %s17, 1
        %s152 = scalar_select %p151, %s17, 1
        %s153 = scalar_lea.vmem %s1, %s152
        %p154 = pneg %p64
        %p155 = pneg %p61
        %p156 = pneg %p85
        %p157 = pneg %p82
        %p158 = scmp.lt.s32.totalorder %s17, 1
        %s159 = scalar_select %p158, %s17, 1
        %s160 = scalar_lea.vmem %s1, %s159
        %p162 = scmp.eq.s32.totalorder %s17, 0
        // Predicated region
        $region33: #{tpu_custom_call.1} parent=27 // pred_check
          %p163 = pneg %p162
        $region34: #{tpu_custom_call.1} parent=27 // pred_check_branch
          %165 = sbr.rel (%p163) target = $region36
        $region35: #{tpu_custom_call.1} parent=27 // pred_region
          %vm166 = vcmask 7168
          %167 = vst.msk [vmem:[#allocation2] sm:$0xff] %vm166, 0.0
        $region36: #{tpu_custom_call.1} parent=27 // pred_fallthru
          _
        %v168 = vld [vmem:[%s139] sm:$0xf]
        %vm169 = vcmask 125952
        %v172 = vsel %vm169, %v168, 4286644096
        %174 = vmax.xlane.bf16.xlu0 %v172
        %v175 = vpop.xlane.xlu0 %174
        %v176 = vunpack.c.l.bf16 %v175
        %v177 = vunpack.c.l.bf16 %v168
        %v178 = vsub.f32 %v177, %v176
        %v179 = vmul.f32 %v178, 1.442695
        %v180 = vpow.pop %v179
        %vm181 = vcmask 130048
        %v182 = vsel %vm181, %v180, 0.0
        %183 = vadd.xlane.f32.xlu0 %v182
        %v184 = vpop.xlane.xlu0 %183
        %v185 = vlog2.pop %v184
        %v186 = vmul.f32 %v185, 0.6931472
        %v187 = vld [vmem:[%s160] sm:$0x1]
        %188 = vxpose.xlu0.b32.start [1/16] %v187, 128
        %189 = vxpose.xlu0.b32.cont [2/16] 0, 128
        %190 = vxpose.xlu0.b32.cont [3/16] 0, 128
        %191 = vxpose.xlu0.b32.cont [4/16] 0, 128
        %192 = vxpose.xlu0.b32.cont [5/16] 0, 128
        %193 = vxpose.xlu0.b32.cont [6/16] 0, 128
        %194 = vxpose.xlu0.b32.cont [7/16] 0, 128
        %195 = vxpose.xlu0.b32.cont [8/16] 0, 128
        %196 = vxpose.xlu0.b32.cont [9/16] 0, 128
        %197 = vxpose.xlu0.b32.cont [10/16] 0, 128
        %198 = vxpose.xlu0.b32.cont [11/16] 0, 128
        %199 = vxpose.xlu0.b32.cont [12/16] 0, 128
        %200 = vxpose.xlu0.b32.cont [13/16] 0, 128
        %201 = vxpose.xlu0.b32.cont [14/16] 0, 128
        %202 = vxpose.xlu0.b32.cont [15/16] 0, 128
        %203 = vxpose.xlu0.b32.end [16/16] 0, 128
        %v204 = vpop.trf.xlu0
        %v205 = vpop.trf.xlu0
        %v206 = vpop.trf.xlu0
        %v207 = vpop.trf.xlu0
        %v208 = vpop.trf.xlu0
        %v209 = vpop.trf.xlu0
        %v210 = vpop.trf.xlu0
        %v211 = vpop.trf.xlu0
        %v212 = vpop.trf.xlu0
        %v213 = vpop.trf.xlu0
        %v214 = vpop.trf.xlu0
        %v215 = vpop.trf.xlu0
        %v216 = vpop.trf.xlu0
        %v217 = vpop.trf.xlu0
        %v218 = vpop.trf.xlu0
        %v219 = vpop.trf.xlu0
        %v220 = vlaneseq
        %v221 = vand.u32 %v220, 127
        %222 = vset.pattern.permute.xlu0 0
        %223 = vperm.xlu0 %222, %v204
        %v224 = vpop.permute.xlu0 %223
        %vm225 = vcmp.eq.s32.totalorder %v221, %v224
        %v226 = vsel %vm225, %v178, 0.0
        %v227 = vsel %vm181, %v226, 0.0
        %228 = vadd.xlane.f32.xlu0 %v227
        %v229 = vpop.xlane.xlu0 %228
        %v230 = vsub.f32 %v229, %v186
        %v231 = vmul.f32 %v230, 1.442695
        %v232 = vpow.pop %v231
        %vm233 = vcmp.gt.s32.totalorder %v204, 0
        %v234 = vsel %vm233, 0.25, 0.75
        %v235 = vsub.f32 1.0, %v232
        %v236 = vmax.f32 %v235, 0.0
        %v237 = vmul.f32 %v236, %v236
        %v238 = vsub.f32 0.0, %v237
        %v239 = vmul.f32 %v234, %v230
        %v240 = vmul.f32 %v238, %v239
        %v241 = vlaneseq
        %v242 = vshrl.u32 %v241, 7
        %s243 = smul.u32 %s17, 8
        %v244 = vstv %s243
        %v245 = vadd.s32 %v242, %v244
        %vm246 = vcmp.lt.s32.totalorder %v245, 12
        %v247 = vsel %vm246, %v240, 0.0
        %v248 = vld [vmem:[#allocation2] sm:$0xff]
        %v249 = vadd.f32 %v248, %v247
        %vm250 = vcmask 7168
        %251 = vst.msk [vmem:[#allocation2] sm:$0xff] %vm250, %v249
        %p252 = scmp.eq.s32.totalorder %s17, 1
        // Predicated region
        $region37: #{tpu_custom_call.1} parent=27 // pred_check
          %p253 = pneg %p252
        $region38: #{tpu_custom_call.1} parent=27 // pred_check_branch
          %255 = sbr.rel (%p253) target = $region40
        $region39: #{tpu_custom_call.1} parent=27 // pred_region
          %v256 = vld [vmem:[#allocation2] sm:$0xff]
          %v257 = vsel %vm250, %v256, 0.0
          %v258 = vrot.slane %v257, 4
          %v259 = vadd.f32 %v257, %v258
          %v260 = vrot.slane %v259, 2
          %v261 = vadd.f32 %v259, %v260
          %v262 = vrot.slane %v261, 1
          %v263 = vadd.f32 %v261, %v262
          %v264 = vmul.f32 %v263, 0.083333336
          %266 = vset.pattern.permute.xlu0 0
          %267 = vperm.xlu0 %266, %v264
          %v268 = vpop.permute.xlu0 %267
          %270 = vst [vmem:[#allocation6] sm:$0xff] %v268
        $region40: #{tpu_custom_call.1} parent=27 // pred_fallthru
          _
        // Predicated region
        $region41: #{tpu_custom_call.1} parent=27 // pred_check
          %p271 = pneg %p82
        $region42: #{tpu_custom_call.1} parent=27 // pred_check_branch
          %273 = sbr.rel (%p271) target = $region44
        $region43: #{tpu_custom_call.1} parent=27 // pred_region
          %s275 = ssub.s32 128, 128
          %276 = vsyncadd [#allocation5], %s275
          %s278 = sshll.u32 [#allocation6], 4
          %s279 = int_to_ptr.vmem [resolvable:$true] %s278
          %281 = dma.vmem_to_hbm [thread:$0]  %s279, 128, %s2, [#allocation5]
        $region44: #{tpu_custom_call.1} parent=27 // pred_fallthru
          _
        // Predicated region
        $region45: #{tpu_custom_call.1} parent=27 // pred_check
          %p282 = pneg %p82
        $region46: #{tpu_custom_call.1} parent=27 // pred_check_branch
          %284 = sbr.rel (%p282) target = $region48
        $region47: #{tpu_custom_call.1} parent=27 // pred_region
          %285 = dma.done [#allocation5], 128
        $region48: #{tpu_custom_call.1} parent=27 // pred_fallthru
          _
      $region28: #{tpu_custom_call.1} parent=5 // pred_fallthru
        _
      %p286 = scmp.le.s32.totalorder 2, %s12
      // Predicated region
      $region49: #{tpu_custom_call.1} parent=5 // pred_check
        %p287 = pneg %p286
      $region50: #{tpu_custom_call.1} parent=5 // pred_check_branch
        %289 = sbr.rel (%p287) target = $region52
      $region51: #{tpu_custom_call.1} parent=5 // pred_region
        %s290 = ssub.s32 %s12, 2
      $region52: #{tpu_custom_call.1} parent=5 // pred_fallthru
        _
    $region6: #{tpu_custom_call.1} parent=1 // loop_footer
      %s16 = sadd.s32 1, %s12
    $region7: #{tpu_custom_call.1} parent=1 // loop_footer_branch
      %11 = sbr.rel target = $region3
    $region8: #{tpu_custom_call.1} parent=1 // loop_exit
      _
    %291 = vsyncpa [#allocation4], 1
    %s292 = scalar_lea.sflag [#allocation4], 1
    %293 = vsyncpa %s292, 1
    %294 = vsyncpa [#allocation5], 1
    %s295 = scalar_lea.sflag [#allocation5], 1
    %296 = vsyncpa %s295, 1

// kernel: tpu_custom_call.1
$region0: #{tpu_custom_call.1}
  #allocation0 [shape = 'u32[]', space=smem, size = 0x4, offset = 0x4, fixed_abs, tag = 'smem constant byte address 0x4 - core index']
  #allocation1 [shape = 'u32[144,128]{1,0:T(1,128)}', space=vmem, size = 0x12000, scoped, tag = 'internal scratch']
  #allocation2 [shape = 'f32[8,1]{1,0:T(8,128)}', space=vmem, size = 0x1000, scoped, tag = 'scratch operand']
  %s0 = inlined_call_operand.vmem [shape: bf16[12,16], index: 0, kind: input, shape index: {}]
  %s1 = inlined_call_operand.vmem [shape: s32[16,1], index: 1, kind: input, shape index: {}]
  %s2 = inlined_call_operand.hbm [shape: f32[8,128], index: 2, kind: output, shape index: {}]
  %s3 = sld [smem:[#allocation0]]
  $region49: #{tpu_custom_call.1} parent=0
    _
  %s5 = ssub.s32 1, %s3
  %s6 = scalar_select 0, %s5, %s3
  $region1: #{tpu_custom_call.1} parent=0
    #allocation3 [shape = 'u8[4096]{0}', space=vmem, size = 0x1000, scoped, tag = 'output window, operand 0, single buffered']
    #allocation4 [shape = 's32[2]{0}', space=sflag, size = 0x8, scoped, tag = 'scoped memory for tpu_custom_call.1']
    %7 = vsyncpa [#allocation4], 0
    loop: start=0, step=1, limit=4
    $region2: #{tpu_custom_call.1} parent=1 // loop_pre_header
      _
    $region3: #{tpu_custom_call.1} parent=1 // loop_header
      %s9 = sphi 0, %s13
      %p10 = scmp.ge.s32.totalorder %s9, 4
      %s19 = sphi 0, %s21
      %s22 = sphi 0, %s19
      %s23 = sphi 0, %s22
      %s39 = sphi 0, %s23
      %s45 = sphi 0, %s47
      %s48 = sphi 0, %s45
      %s49 = sphi 0, %s48
      %s65 = sphi 0, %s49
      %s69 = sphi 0, %s69
      %s71 = sphi 0, %s69
      %s72 = sphi 0, %s71
      %s86 = sphi 0, %s72
    $region4: #{tpu_custom_call.1} parent=1 // loop_header_branch
      %12 = sbr.rel (%p10) target = $region8
    $region5: #{tpu_custom_call.1} parent=1 // loop_body
      %s14 = ssub.s32 %s9, 1
      %s15 = ssub.s32 %s9, 2
      %s16 = sadd.s32 %s9, 1
      %s17 = ssub.s32 %s9, %s16
      %p18 = scmp.eq.s32.totalorder %s17, 0
      %s20 = sadd.s32 %s19, 1
      %s21 = scalar_select %p18, %s19, %s20
      %p24 = pneg %p18
      %p25 = scmp.eq.s32.totalorder %s9, 1
      %p26 = por %p24, %p25
      %p27 = scmp.ne.s32.totalorder %s19, %s22
      %p28 = scmp.eq.s32.totalorder %s9, 0
      %p29 = por %p27, %p28
      %p30 = scmp.ne.s32.totalorder %s19, %s22
      %p31 = scmp.eq.s32.totalorder %s14, 1
      %p32 = por %p30, %p31
      %p33 = scmp.ne.s32.totalorder %s22, %s23
      %p34 = scmp.eq.s32.totalorder %s14, 0
      %p35 = por %p33, %p34
      %p36 = scmp.ne.s32.totalorder %s22, %s23
      %p37 = scmp.eq.s32.totalorder %s15, 1
      %p38 = por %p36, %p37
      %p40 = scmp.ne.s32.totalorder %s23, %s39
      %p41 = scmp.eq.s32.totalorder %s15, 0
      %p42 = por %p40, %p41
      %s43 = ssub.s32 %s9, %s16
      %p44 = scmp.eq.s32.totalorder %s43, 0
      %s46 = sadd.s32 %s45, 1
      %s47 = scalar_select %p44, %s45, %s46
      %p50 = pneg %p44
      %p51 = scmp.eq.s32.totalorder %s9, 1
      %p52 = por %p50, %p51
      %p53 = scmp.ne.s32.totalorder %s45, %s48
      %p54 = scmp.eq.s32.totalorder %s9, 0
      %p55 = por %p53, %p54
      %p56 = scmp.ne.s32.totalorder %s45, %s48
      %p57 = scmp.eq.s32.totalorder %s14, 1
      %p58 = por %p56, %p57
      %p59 = scmp.ne.s32.totalorder %s48, %s49
      %p60 = scmp.eq.s32.totalorder %s14, 0
      %p61 = por %p59, %p60
      %p62 = scmp.ne.s32.totalorder %s48, %s49
      %p63 = scmp.eq.s32.totalorder %s15, 1
      %p64 = por %p62, %p63
      %p66 = scmp.ne.s32.totalorder %s49, %s65
      %p67 = scmp.eq.s32.totalorder %s15, 0
      %p68 = por %p66, %p67
      %s70 = sadd.s32 %s69, 1
      %p73 = scmp.eq.s32.totalorder %s9, 1
      %p74 = scmp.ne.s32.totalorder %s69, %s71
      %p75 = scmp.eq.s32.totalorder %s9, 0
      %p76 = por %p74, %p75
      %p77 = scmp.ne.s32.totalorder %s69, %s71
      %p78 = scmp.eq.s32.totalorder %s14, 1
      %p79 = por %p77, %p78
      %p80 = scmp.ne.s32.totalorder %s71, %s72
      %p81 = scmp.eq.s32.totalorder %s14, 0
      %p82 = por %p80, %p81
      %p83 = scmp.ne.s32.totalorder %s71, %s72
      %p84 = scmp.eq.s32.totalorder %s15, 1
      %p85 = por %p83, %p84
      %p87 = scmp.ne.s32.totalorder %s72, %s86
      %p88 = scmp.eq.s32.totalorder %s15, 0
      %p89 = por %p87, %p88
      %p90 = scmp.le.s32.totalorder 1, %s9
      %p91 = scmp.lt.s32.totalorder %s9, 3
      %p92 = pnand %p90, %p91
      %p93 = pneg %p92
      // Predicated region
      $region9: #{tpu_custom_call.1} parent=5 // pred_check
        _
      $region10: #{tpu_custom_call.1} parent=5 // pred_check_branch
        %95 = sbr.rel (%p92) target = $region12
      $region11: #{tpu_custom_call.1} parent=5 // pred_region
        %s96 = ssub.s32 %s9, 1
      $region12: #{tpu_custom_call.1} parent=5 // pred_fallthru
        _
      %p97 = scmp.lt.s32.totalorder %s9, 2
      // Predicated region
      $region13: #{tpu_custom_call.1} parent=5 // pred_check
        %p98 = pneg %p97
      $region14: #{tpu_custom_call.1} parent=5 // pred_check_branch
        %100 = sbr.rel (%p98) target = $region16
      $region15: #{tpu_custom_call.1} parent=5 // pred_region
        // Predicated region
        $region17: #{tpu_custom_call.1} parent=15 // pred_check
          %p101 = pneg %p29
        $region18: #{tpu_custom_call.1} parent=15 // pred_check_branch
          %103 = sbr.rel (%p101) target = $region20
        $region19: #{tpu_custom_call.1} parent=15 // pred_region
          %p104 = scmp.lt.s32.totalorder %s9, 1
          %s105 = scalar_select %p104, %s9, 1
          %s106 = smul.addr %s105, 4
          %s107 = scalar_lea.vmem %s0, %s106
        $region20: #{tpu_custom_call.1} parent=15 // pred_fallthru
          _
        // Predicated region
        $region21: #{tpu_custom_call.1} parent=15 // pred_check
          %p108 = pneg %p55
        $region22: #{tpu_custom_call.1} parent=15 // pred_check_branch
          %110 = sbr.rel (%p108) target = $region24
        $region23: #{tpu_custom_call.1} parent=15 // pred_region
          %p111 = scmp.lt.s32.totalorder %s9, 1
          %s112 = scalar_select %p111, %s9, 1
          %s113 = smul.addr %s112, 8
          %s114 = scalar_lea.vmem %s1, %s113
        $region24: #{tpu_custom_call.1} parent=15 // pred_fallthru
          _
      $region16: #{tpu_custom_call.1} parent=5 // pred_fallthru
        _
      %p115 = scmp.le.s32.totalorder 1, %s9
      %p116 = scmp.lt.s32.totalorder %s9, 3
      %p117 = pnand %p115, %p116
      %p118 = pneg %p117
      // Predicated region
      $region25: #{tpu_custom_call.1} parent=5 // pred_check
        _
      $region26: #{tpu_custom_call.1} parent=5 // pred_check_branch
        %120 = sbr.rel (%p117) target = $region28
      $region27: #{tpu_custom_call.1} parent=5 // pred_region
        %s121 = ssub.s32 %s9, 1
        %p122 = scmp.lt.s32.totalorder %s14, 1
        %s123 = scalar_select %p122, %s14, 1
        %s124 = smul.addr %s123, 4
        %s125 = scalar_lea.vmem %s0, %s124
        %p126 = pneg %p35
        %p127 = pneg %p32
        %p128 = scmp.lt.s32.totalorder %s14, 1
        %s129 = scalar_select %p128, %s14, 1
        %s130 = smul.addr %s129, 8
        %s131 = scalar_lea.vmem %s1, %s130
        %p132 = pneg %p61
        %p133 = pneg %p58
        %p134 = pneg %p82
        %p135 = pneg %p79
        %p136 = scmp.lt.s32.totalorder %s14, 1
        %s137 = scalar_select %p136, %s14, 1
        %s138 = smul.addr %s137, 4
        %s139 = scalar_lea.vmem %s0, %s138
        %p140 = scmp.lt.s32.totalorder %s14, 1
        %s141 = scalar_select %p140, %s14, 1
        %s142 = smul.addr %s141, 8
        %s143 = scalar_lea.vmem %s1, %s142
        %p145 = scmp.eq.s32.totalorder %s14, 0
        // Predicated region
        $region29: #{tpu_custom_call.1} parent=27 // pred_check
          %p146 = pneg %p145
        $region30: #{tpu_custom_call.1} parent=27 // pred_check_branch
          %148 = sbr.rel (%p146) target = $region32
        $region31: #{tpu_custom_call.1} parent=27 // pred_region
          %vm149 = vcmask 7168
          %150 = vst.msk [vmem:[#allocation2] sm:$0xff] %vm149, 0.0
        $region32: #{tpu_custom_call.1} parent=27 // pred_fallthru
          _
        %v151 = vld [vmem:[%s139] sm:$0xf]
        %vm152 = vcmask 125952
        %v155 = vsel %vm152, %v151, 4286644096
        %157 = vmax.xlane.bf16.xlu0 %v155
        %v158 = vpop.xlane.xlu0 %157
        %v159 = vunpack.c.l.bf16 %v158
        %v160 = vunpack.c.l.bf16 %v151
        %v161 = vsub.f32 %v160, %v159
        %v162 = vmul.f32 %v161, 1.442695
        %v163 = vpow.pop %v162
        %vm164 = vcmask 130048
        %v165 = vsel %vm164, %v163, 0.0
        %166 = vadd.xlane.f32.xlu0 %v165
        %v167 = vpop.xlane.xlu0 %166
        %v168 = vlog2.pop %v167
        %v169 = vmul.f32 %v168, 0.6931472
        %v170 = vld [vmem:[%s143] sm:$0xff]
        %v171 = vlaneseq
        %v172 = vand.u32 %v171, 127
        %173 = vset.pattern.permute.xlu0 0
        %174 = vperm.xlu0 %173, %v170
        %v175 = vpop.permute.xlu0 %174
        %vm176 = vcmp.eq.s32.totalorder %v172, %v175
        %v177 = vsel %vm176, %v161, 0.0
        %v178 = vsel %vm164, %v177, 0.0
        %179 = vadd.xlane.f32.xlu0 %v178
        %v180 = vpop.xlane.xlu0 %179
        %v181 = vsub.f32 %v180, %v169
        %v182 = vmul.f32 %v181, 1.442695
        %v183 = vpow.pop %v182
        %vm184 = vcmp.gt.s32.totalorder %v170, 0
        %v185 = vsel %vm184, 0.25, 0.75
        %v186 = vsub.f32 1.0, %v183
        %v187 = vmax.f32 %v186, 0.0
        %v188 = vmul.f32 %v187, %v187
        %v189 = vsub.f32 0.0, %v188
        %v190 = vmul.f32 %v185, %v181
        %v191 = vmul.f32 %v189, %v190
        %v192 = vlaneseq
        %v193 = vshrl.u32 %v192, 7
        %s194 = smul.u32 %s14, 8
        %v195 = vstv %s194
        %v196 = vadd.s32 %v193, %v195
        %vm197 = vcmp.lt.s32.totalorder %v196, 12
        %v198 = vsel %vm197, %v191, 0.0
        %v199 = vld [vmem:[#allocation2] sm:$0xff]
        %v200 = vadd.f32 %v199, %v198
        %vm201 = vcmask 7168
        %202 = vst.msk [vmem:[#allocation2] sm:$0xff] %vm201, %v200
        %p203 = scmp.eq.s32.totalorder %s14, 1
        // Predicated region
        $region33: #{tpu_custom_call.1} parent=27 // pred_check
          %p204 = pneg %p203
        $region34: #{tpu_custom_call.1} parent=27 // pred_check_branch
          %206 = sbr.rel (%p204) target = $region36
        $region35: #{tpu_custom_call.1} parent=27 // pred_region
          %v207 = vld [vmem:[#allocation2] sm:$0xff]
          %v208 = vsel %vm201, %v207, 0.0
          %v209 = vrot.slane %v208, 4
          %v210 = vadd.f32 %v208, %v209
          %v211 = vrot.slane %v210, 2
          %v212 = vadd.f32 %v210, %v211
          %v213 = vrot.slane %v212, 1
          %v214 = vadd.f32 %v212, %v213
          %v215 = vmul.f32 %v214, 0.083333336
          %217 = vset.pattern.permute.xlu0 0
          %218 = vperm.xlu0 %217, %v215
          %v219 = vpop.permute.xlu0 %218
          %221 = vst [vmem:[#allocation3] sm:$0xff] %v219
        $region36: #{tpu_custom_call.1} parent=27 // pred_fallthru
          _
        // Predicated region
        $region37: #{tpu_custom_call.1} parent=27 // pred_check
          %p222 = pneg %p79
        $region38: #{tpu_custom_call.1} parent=27 // pred_check_branch
          %224 = sbr.rel (%p222) target = $region40
        $region39: #{tpu_custom_call.1} parent=27 // pred_region
          %s226 = ssub.s32 128, 128
          %227 = vsyncadd [#allocation4], %s226
          %s229 = sshll.u32 [#allocation3], 4
          %s230 = int_to_ptr.vmem [resolvable:$true] %s229
          %232 = dma.vmem_to_hbm [thread:$0]  %s230, 128, %s2, [#allocation4]
        $region40: #{tpu_custom_call.1} parent=27 // pred_fallthru
          _
        // Predicated region
        $region41: #{tpu_custom_call.1} parent=27 // pred_check
          %p233 = pneg %p79
        $region42: #{tpu_custom_call.1} parent=27 // pred_check_branch
          %235 = sbr.rel (%p233) target = $region44
        $region43: #{tpu_custom_call.1} parent=27 // pred_region
          %236 = dma.done [#allocation4], 128
        $region44: #{tpu_custom_call.1} parent=27 // pred_fallthru
          _
      $region28: #{tpu_custom_call.1} parent=5 // pred_fallthru
        _
      %p237 = scmp.le.s32.totalorder 2, %s9
      // Predicated region
      $region45: #{tpu_custom_call.1} parent=5 // pred_check
        %p238 = pneg %p237
      $region46: #{tpu_custom_call.1} parent=5 // pred_check_branch
        %240 = sbr.rel (%p238) target = $region48
      $region47: #{tpu_custom_call.1} parent=5 // pred_region
        %s241 = ssub.s32 %s9, 2
      $region48: #{tpu_custom_call.1} parent=5 // pred_fallthru
        _
    $region6: #{tpu_custom_call.1} parent=1 // loop_footer
      %s13 = sadd.s32 1, %s9
    $region7: #{tpu_custom_call.1} parent=1 // loop_footer_branch
      %8 = sbr.rel target = $region3
    $region8: #{tpu_custom_call.1} parent=1 // loop_exit
      _
    %242 = vsyncpa [#allocation4], 1
    %s243 = scalar_lea.sflag [#allocation4], 1
    %244 = vsyncpa %s243, 1

</llo_original>
